<compile_context>
chip_gen: v5e
topology: v5e:2x2
jax: 0.10.0
libtpu: 0.0.40
codegen_flags: <defaults>
</compile_context>

<pallas_src>
import jax
import jax.numpy as jnp
from jax import lax
from jax.experimental import pallas as pl
from jax.experimental.pallas import tpu as pltpu


# ---------------------------------------------------------------------------
# Tiling helpers
# ---------------------------------------------------------------------------

def _vmem_budget():
    """3/4 of physical VMEM (v5e/v6e: 128 MiB -> 96, v7x: 64 MiB -> 48)."""
    cap = None
    try:
        cap = getattr(pltpu.get_tpu_info(), "vmem_capacity_bytes", None)
    except Exception:
        cap = None
    if not cap:
        cap = 64 << 20                      # conservative fallback (v7x per-TC VMEM)
    return int(cap) * 3 // 4


def _pick_batch_tile(B, bytes_per_batch, weight_bytes, budget):
    """Batch tile for the fused path; 0 means 'one batch element does not fit'."""
    # double-buffered input + output blocks (4 * block) + weight copies must fit
    max_tb = (budget - 4 * weight_bytes) // (4 * bytes_per_batch)
    if max_tb < 1:
        return 0
    target_tb = max(1, (12 << 20) // bytes_per_batch)   # ~12 MiB input blocks
    tb = max(1, min(B, int(max_tb), target_tb))
    if B >= 4:
        tb = min(tb, (B + 3) // 4)          # >=4 grid steps: both v7x TCs get >=2 each
    return tb


def _pick_hw_tile(HW, C, elem, budget):
    """Lane-axis (HW) tile for the two-pass fallback; a multiple of 128."""
    denom = C * elem
    max_thw = max(128, ((budget // 2) // (4 * denom)) // 128 * 128)
    target_thw = max(128, ((8 << 20) // denom) // 128 * 128)
    thw = min(max_thw, target_thw)
    return HW if thw >= HW else thw


# ---------------------------------------------------------------------------
# Fused single-pass kernel (pool -> fc1 -> ReLU -> fc2 -> sigmoid -> rescale)
# ---------------------------------------------------------------------------

def _pooled_sum_f32(x_ref):
    """Sum over the HW (lane) axis, f32-accumulated, without a full-tile f32 temp."""
    tb, C, HW = x_ref.shape
    if jnp.dtype(x_ref.dtype).itemsize >= 4 or HW <= 1024:
        # f32 input (cast is a no-op) or small tile: the temp is negligible.
        return jnp.sum(x_ref[...].astype(jnp.float32), axis=-1)

    chunk = 1024
    n_full = HW // chunk

    def body(i, acc):
        off = pl.multiple_of(i * chunk, chunk)
        xs = x_ref[:, :, pl.ds(off, chunk)].astype(jnp.float32)
        return acc + jnp.sum(xs, axis=-1)

    acc = lax.fori_loop(0, n_full, body, jnp.zeros((tb, C), jnp.float32))
    rem = HW - n_full * chunk
    if rem:
        acc = acc + jnp.sum(
            x_ref[:, :, pl.ds(n_full * chunk, rem)].astype(jnp.float32), axis=-1)
    return acc


def se_kernel(x_ref, w1_ref, w2_ref, o_ref):
    # x_ref : (TB, C, HW) native dtype     (C on sublanes, HW on lanes)
    # w1_ref: (hidden, C) fc1 weight       (PyTorch nn.Linear layout)
    # w2_ref: (C, hidden) fc2 weight       (PyTorch nn.Linear layout)
    HW = x_ref.shape[-1]

    # Global average pool == AdaptiveAvgPool2d(1).squeeze(), f32 accumulate.
    s = _pooled_sum_f32(x_ref) * (1.0 / HW)                     # (TB, C) f32

    # fc1 (no bias) + ReLU: contract over C; feed the MXU native-dtype weights.
    w1 = w1_ref[...]
    h = lax.dot_general(s.astype(w1.dtype), w1,
                        dimension_numbers=(((1,), (1,)), ((), ())),
                        preferred_element_type=jnp.float32)     # (TB, hidden)
    h = jnp.maximum(h, 0.0)

    # fc2 (no bias) + sigmoid: contract over hidden.
    w2 = w2_ref[...]
    g = lax.dot_general(h.astype(w2.dtype), w2,
                        dimension_numbers=(((1,), (1,)), ((), ())),
                        preferred_element_type=jnp.float32)     # (TB, C)
    g = jax.nn.sigmoid(g)

    # Rescale: re-read the VMEM input block (keeps vreg pressure low; nothing
    # tile-sized stays live across the fc chain).  Only the tiny gate is cast
    # to the input dtype (slight bf16 rounding of the gate is acceptable).
    o_ref[...] = (x_ref[...] * g[:, :, None].astype(x_ref.dtype)).astype(o_ref.dtype)


def _se_fused(x3, w1, w2, tb, weight_bytes, budget):
    B, C, HW = x3.shape
    hidden = w1.shape[0]
    elem = jnp.dtype(x3.dtype).itemsize

    grid = ((B + tb - 1) // tb,)
    block_bytes = tb * C * HW * elem
    vmem_limit = int(min(max(4 * block_bytes + 4 * weight_bytes + (4 << 20), 16 << 20),
                         budget))

    cost = pl.CostEstimate(
        flops=4 * B * C * hidden + 2 * B * C * HW,      # two fcs + pool adds + rescale muls
        transcendentals=B * C,                          # sigmoid
        bytes_accessed=2 * B * C * HW * elem + weight_bytes,
    )

    return pl.pallas_call(
        se_kernel,
        out_shape=jax.ShapeDtypeStruct((B, C, HW), x3.dtype),
        grid_spec=pltpu.PrefetchScalarGridSpec(
            num_scalar_prefetch=0,
            grid=grid,
            in_specs=[
                pl.BlockSpec((tb, C, HW), lambda b: (b, 0, 0)),
                pl.BlockSpec((hidden, C), lambda b: (0, 0)),
                pl.BlockSpec((C, hidden), lambda b: (0, 0)),
            ],
            out_specs=pl.BlockSpec((tb, C, HW), lambda b: (b, 0, 0)),
        ),
        compiler_params=pltpu.CompilerParams(
            dimension_semantics=("parallel",),
            vmem_limit_bytes=vmem_limit,
        ),
        cost_estimate=cost,
    )(x3, w1, w2)


# ---------------------------------------------------------------------------
# Two-pass fallback: tile HW when a single (C, HW) slab exceeds the VMEM budget
# ---------------------------------------------------------------------------

def _se_two_pass(x3, w1, w2, budget):
    B, C, HW = x3.shape
    elem = jnp.dtype(x3.dtype).itemsize
    thw = _pick_hw_tile(HW, C, elem, budget)
    n_hw = (HW + thw - 1) // thw
    needs_mask = (HW % thw) != 0

    def pool_kernel(x_ref, s_ref, acc_ref):
        hw_i = pl.program_id(1)

        @pl.when(hw_i == 0)
        def _():
            acc_ref[...] = jnp.zeros_like(acc_ref)

        xb = x_ref[...].astype(jnp.float32)                       # (1, C, thw)
        if needs_mask:                                            # zero padded lanes
            lane = lax.broadcasted_iota(jnp.int32, xb.shape, 2)
            xb = jnp.where(hw_i * thw + lane < HW, xb, 0.0)
        acc_ref[...] += jnp.sum(xb, axis=-1, keepdims=True)       # (1, C, 1)

        @pl.when(hw_i == pl.num_programs(1) - 1)
        def _():
            s_ref[...] = acc_ref[...] * (1.0 / HW)

    pooled = pl.pallas_call(
        pool_kernel,
        out_shape=jax.ShapeDtypeStruct((B, C, 1), jnp.float32),
        grid_spec=pltpu.PrefetchScalarGridSpec(
            num_scalar_prefetch=0,
            grid=(B, n_hw),
            in_specs=[pl.BlockSpec((1, C, thw), lambda b, h: (b, 0, h))],
            out_specs=pl.BlockSpec((1, C, 1), lambda b, h: (b, 0, 0)),
            scratch_shapes=[pltpu.VMEM((1, C, 1), jnp.float32)],
        ),
        compiler_params=pltpu.CompilerParams(
            dimension_semantics=("parallel", "arbitrary"),
            vmem_limit_bytes=budget,
        ),
    )(x3)

    # Tiny (B, C) gate: fc1 -> ReLU -> fc2 -> sigmoid in plain JAX (negligible).
    s = pooled.reshape(B, C)
    h = jnp.maximum(s @ w1.astype(s.dtype).T, 0.0)
    g = jax.nn.sigmoid(h @ w2.astype(s.dtype).T)
    g3 = g.reshape(B, C, 1)

    def scale_kernel(x_ref, g_ref, o_ref):
        o_ref[...] = (x_ref[...] * g_ref[...].astype(x_ref.dtype)).astype(o_ref.dtype)

    return pl.pallas_call(
        scale_kernel,
        out_shape=jax.ShapeDtypeStruct((B, C, HW), x3.dtype),
        grid_spec=pltpu.PrefetchScalarGridSpec(
            num_scalar_prefetch=0,
            grid=(B, n_hw),
            in_specs=[pl.BlockSpec((1, C, thw), lambda b, h: (b, 0, h)),
                      pl.BlockSpec((1, C, 1), lambda b, h: (b, 0, 0))],
            out_specs=pl.BlockSpec((1, C, thw), lambda b, h: (b, 0, h)),
        ),
        compiler_params=pltpu.CompilerParams(
            dimension_semantics=("parallel", "parallel"),
            vmem_limit_bytes=budget,
        ),
    )(x3, g3)


# ---------------------------------------------------------------------------
# Public wrapper (matches the PyTorch SEModule.forward semantics)
# ---------------------------------------------------------------------------

def se_module(x, w1, w2):
    """x: (B, C, H, W); w1: (hidden, C); w2: (C, hidden)  (PyTorch Linear layouts)."""
    B, C, H, W = x.shape
    hidden = w1.shape[0]
    assert hidden >= 1, "channels * ratio must be >= 1 (e.g. channels >= 16 at ratio 1/16)"
    HW = H * W
    elem = jnp.dtype(x.dtype).itemsize
    weight_bytes = (int(w1.size) * jnp.dtype(w1.dtype).itemsize
                    + int(w2.size) * jnp.dtype(w2.dtype).itemsize)

    # Free layout change: contiguous NCHW is already (B, C, HW); no HBM transpose.
    x3 = x.reshape(B, C, HW)

    budget = _vmem_budget()
    tb = _pick_batch_tile(B, C * HW * elem, weight_bytes, budget)

    if tb == 0:
        out3 = _se_two_pass(x3, w1, w2, budget)
    else:
        out3 = _se_fused(x3, w1, w2, tb, weight_bytes, budget)
    return out3.reshape(B, C, H, W)


def se_reference(x, w1, w2):
    """Pure-JAX reference mirroring the PyTorch forward."""
    s = jnp.mean(x, axis=(2, 3))                        # avg_pool + squeeze
    h = jnp.maximum(s @ w1.T, 0.0)                      # fc1 + ReLU
    g = jax.nn.sigmoid(h @ w2.T)                        # fc2 + sigmoid
    return x * g[:, :, None, None]


if __name__ == "__main__":
    # channels >= 16 so hidden = int(C/16) >= 1; HW = 256 keeps the lane axis dense.
    B, C, H, W = 4, 128, 16, 16
    ratio = 1.0 / 16.0
    hidden = int(C * ratio)  # 8

    key = jax.random.PRNGKey(0)
    kx, k1, k2 = jax.random.split(key, 3)

    x = jax.random.normal(kx, (B, C, H, W), dtype=jnp.float32)
    # nn.Linear(channels, hidden, bias=False).weight -> (hidden, channels)
    w1 = jax.random.normal(k1, (hidden, C), dtype=jnp.float32) * 0.1
    # nn.Linear(hidden, channels, bias=False).weight -> (channels, hidden)
    w2 = jax.random.normal(k2, (C, hidden), dtype=jnp.float32) * 0.1

    out = jax.block_until_ready(se_module(x, w1, w2))
    ref = se_reference(x, w1, w2)

    assert out.shape == (B, C, H, W)
    assert jnp.allclose(out, ref, atol=3e-5, rtol=3e-5)

    print("KERNEL_OK")
</pallas_src>

<mosaic_0001>
module attributes {stable_mosaic.version = 11 : i64} {
  func.func @se_kernel(%arg0: i32, %arg1: memref<1x128x256xf32, #tpu.memory_space<vmem>>, %arg2: memref<8x128xf32, #tpu.memory_space<vmem>>, %arg3: memref<128x8xf32, #tpu.memory_space<vmem>>, %arg4: memref<1x128x256xf32, #tpu.memory_space<vmem>>) attributes {dimension_semantics = [#tpu.dimension_semantics<parallel>], iteration_bounds = array<i64: 4>, scalar_prefetch = 0 : i64, scratch_operands = 0 : i64, tpu.core_type = #tpu.core_type<tc>, window_params = [{transform_indices = @transform_0, window_bounds = array<i64: 1, 128, 256>}, {pipeline_mode = #tpu.pipeline_mode<synchronous>, transform_indices = @transform_1, window_bounds = array<i64: 8, 128>}, {pipeline_mode = #tpu.pipeline_mode<synchronous>, transform_indices = @transform_2, window_bounds = array<i64: 128, 8>}, {transform_indices = @transform_3, window_bounds = array<i64: 1, 128, 256>}]} {
    %c0 = arith.constant 0 : index
    %c0_0 = arith.constant 0 : index
    %c0_1 = arith.constant 0 : index
    %0 = vector.load %arg1[%c0, %c0_0, %c0_1] : memref<1x128x256xf32, #tpu.memory_space<vmem>>, vector<1x128x256xf32>
    %cst = arith.constant dense<0.000000e+00> : vector<1x128xf32>
    %1 = vector.multi_reduction <add>, %0, %cst [2] : vector<1x128x256xf32> to vector<1x128xf32>
    %cst_2 = arith.constant 3.906250e-03 : f32
    %2 = vector.broadcast %cst_2 : f32 to vector<1x128xf32>
    %3 = arith.mulf %1, %2 : vector<1x128xf32>
    %c0_3 = arith.constant 0 : index
    %c0_4 = arith.constant 0 : index
    %4 = vector.load %arg2[%c0_3, %c0_4] : memref<8x128xf32, #tpu.memory_space<vmem>>, vector<8x128xf32>
    %cst_5 = arith.constant dense<0.000000e+00> : vector<1x8xf32>
    %5 = tpu.matmul %3, %4, %cst_5 {dimension_numbers = #tpu.dot_dimension_numbers<[1], [1], [0], [0], [0, 0, 1, 0], [], []>} : vector<1x128xf32>, vector<8x128xf32>, vector<1x8xf32> -> vector<1x8xf32>
    %cst_6 = arith.constant 0.000000e+00 : f32
    %6 = vector.broadcast %cst_6 : f32 to vector<1x8xf32>
    %7 = arith.maximumf %5, %6 : vector<1x8xf32>
    %c0_7 = arith.constant 0 : index
    %c0_8 = arith.constant 0 : index
    %8 = vector.load %arg3[%c0_7, %c0_8] : memref<128x8xf32, #tpu.memory_space<vmem>>, vector<128x8xf32>
    %cst_9 = arith.constant dense<0.000000e+00> : vector<1x128xf32>
    %9 = tpu.matmul %7, %8, %cst_9 {dimension_numbers = #tpu.dot_dimension_numbers<[1], [1], [0], [0], [0, 0, 1, 0], [], []>} : vector<1x8xf32>, vector<128x8xf32>, vector<1x128xf32> -> vector<1x128xf32>
    %10 = arith.negf %9 : vector<1x128xf32>
    %11 = math.exp %10 : vector<1x128xf32>
    %cst_10 = arith.constant 1.000000e+00 : f32
    %12 = vector.broadcast %cst_10 : f32 to vector<1x128xf32>
    %13 = arith.addf %12, %11 : vector<1x128xf32>
    %14 = arith.divf %12, %13 : vector<1x128xf32>
    %c0_11 = arith.constant 0 : index
    %c0_12 = arith.constant 0 : index
    %c0_13 = arith.constant 0 : index
    %15 = vector.load %arg1[%c0_11, %c0_12, %c0_13] : memref<1x128x256xf32, #tpu.memory_space<vmem>>, vector<1x128x256xf32>
    %16 = vector.shape_cast %14 : vector<1x128xf32> to vector<1x128x1xf32>
    %17 = vector.broadcast %16 : vector<1x128x1xf32> to vector<1x128x256xf32>
    %18 = arith.mulf %15, %17 : vector<1x128x256xf32>
    %c0_14 = arith.constant 0 : index
    %c0_15 = arith.constant 0 : index
    %c0_16 = arith.constant 0 : index
    %19 = vector.load %arg4[%c0_14, %c0_15, %c0_16] : memref<1x128x256xf32, #tpu.memory_space<vmem>>, vector<1x128x256xf32>
    tpu.vector_store %arg4[%c0_14, %c0_15, %c0_16], %18 {strides = array<i32>} : memref<1x128x256xf32, #tpu.memory_space<vmem>>, vector<1x128x256xf32>,
    return
  }
  func.func @transform_0(%arg0: i32) -> (i32, i32, i32) {
    %c0_i32 = arith.constant 0 : i32
    %c0_i32_0 = arith.constant 0 : i32
    %c0_i32_1 = arith.constant 0 : i32
    return %arg0, %c0_i32, %c0_i32_0 : i32, i32, i32
  }
  func.func @transform_1(%arg0: i32) -> (i32, i32) {
    %c0_i32 = arith.constant 0 : i32
    %c0_i32_0 = arith.constant 0 : i32
    %c0_i32_1 = arith.constant 0 : i32
    return %c0_i32, %c0_i32_0 : i32, i32
  }
  func.func @transform_2(%arg0: i32) -> (i32, i32) {
    %c0_i32 = arith.constant 0 : i32
    %c0_i32_0 = arith.constant 0 : i32
    %c0_i32_1 = arith.constant 0 : i32
    return %c0_i32, %c0_i32_0 : i32, i32
  }
  func.func @transform_3(%arg0: i32) -> (i32, i32, i32) {
    %c0_i32 = arith.constant 0 : i32
    %c0_i32_0 = arith.constant 0 : i32
    %c0_i32_1 = arith.constant 0 : i32
    return %arg0, %c0_i32, %c0_i32_0 : i32, i32, i32
  }
}

</mosaic_0001>

<llo_original>
// kernel: tpu_custom_call.1
$region0: #{tpu_custom_call.1}
  #allocation0 [shape = 'u32[]', space=smem, size = 0x4, offset = 0x4, fixed_abs, tag = 'smem constant byte address 0x4 - core index']
  #allocation1 [shape = 'u32[72,128]{1,0:T(1,128)}', space=vmem, size = 0x9000, scoped, tag = 'internal scratch']
  %s0 = inlined_call_operand.hbm [shape: f32[4,128,256], index: 0, kind: input, shape index: {}]
  %s1 = inlined_call_operand.vmem [shape: f32[8,128], index: 1, kind: input, shape index: {}]
  %s2 = inlined_call_operand.vmem [shape: f32[128,8], index: 2, kind: input, shape index: {}]
  %s3 = inlined_call_operand.hbm [shape: f32[4,128,256], index: 3, kind: output, shape index: {}]
  %s4 = sld [smem:[#allocation0]]
  $region49: #{tpu_custom_call.1} parent=0
    _
  %s6 = ssub.s32 1, %s4
  %s7 = scalar_select 0, %s6, %s4
  $region1: #{tpu_custom_call.1} parent=0
    #allocation2 [shape = 'u8[262144]{0}', space=vmem, size = 0x40000, scoped, tag = 'input window, operand 0']
    #allocation3 [shape = 's32[2]{0}', space=sflag, size = 0x8, scoped, tag = 'scoped memory for tpu_custom_call.1']
    #allocation4 [shape = 's32[2]{0}', space=sflag, size = 0x8, scoped, tag = 'scoped memory for tpu_custom_call.1']
    #allocation5 [shape = 'u8[262144]{0}', space=vmem, size = 0x40000, scoped, tag = 'output window, operand 0']
    %8 = vsyncpa [#allocation3], 0
    %s9 = scalar_lea.sflag [#allocation3], 1
    %10 = vsyncpa %s9, 0
    %11 = vsyncpa [#allocation4], 0
    %s12 = scalar_lea.sflag [#allocation4], 1
    %13 = vsyncpa %s12, 0
    loop: start=0, step=1, limit=6
    $region2: #{tpu_custom_call.1} parent=1 // loop_pre_header
      _
    $region3: #{tpu_custom_call.1} parent=1 // loop_header
      %s15 = sphi 0, %s19
      %p16 = scmp.ge.s32.totalorder %s15, 6
      %s25 = sphi 0, %s27
      %s28 = sphi 0, %s25
      %s29 = sphi 0, %s28
      %s45 = sphi 0, %s29
      %s49 = sphi 0, %s49
      %s51 = sphi 0, %s49
      %s52 = sphi 0, %s51
      %s66 = sphi 0, %s52
      %s70 = sphi 0, %s70
      %s72 = sphi 0, %s70
      %s73 = sphi 0, %s72
      %s87 = sphi 0, %s73
      %s93 = sphi 0, %s95
      %s96 = sphi 0, %s93
      %s97 = sphi 0, %s96
      %s113 = sphi 0, %s97
    $region4: #{tpu_custom_call.1} parent=1 // loop_header_branch
      %18 = sbr.rel (%p16) target = $region8
    $region5: #{tpu_custom_call.1} parent=1 // loop_body
      %s20 = ssub.s32 %s15, 1
      %s21 = ssub.s32 %s15, 2
      %s22 = sadd.s32 %s15, 1
      %s23 = ssub.s32 %s15, %s22
      %p24 = scmp.eq.s32.totalorder %s23, 0
      %s26 = sadd.s32 %s25, 1
      %s27 = scalar_select %p24, %s25, %s26
      %p30 = pneg %p24
      %p31 = scmp.eq.s32.totalorder %s15, 3
      %p32 = por %p30, %p31
      %p33 = scmp.ne.s32.totalorder %s25, %s28
      %p34 = scmp.eq.s32.totalorder %s15, 0
      %p35 = por %p33, %p34
      %p36 = scmp.ne.s32.totalorder %s25, %s28
      %p37 = scmp.eq.s32.totalorder %s20, 3
      %p38 = por %p36, %p37
      %p39 = scmp.ne.s32.totalorder %s28, %s29
      %p40 = scmp.eq.s32.totalorder %s20, 0
      %p41 = por %p39, %p40
      %p42 = scmp.ne.s32.totalorder %s28, %s29
      %p43 = scmp.eq.s32.totalorder %s21, 3
      %p44 = por %p42, %p43
      %p46 = scmp.ne.s32.totalorder %s29, %s45
      %p47 = scmp.eq.s32.totalorder %s21, 0
      %p48 = por %p46, %p47
      %s50 = sadd.s32 %s49, 1
      %p53 = scmp.eq.s32.totalorder %s15, 3
      %p54 = scmp.ne.s32.totalorder %s49, %s51
      %p55 = scmp.eq.s32.totalorder %s15, 0
      %p56 = por %p54, %p55
      %p57 = scmp.ne.s32.totalorder %s49, %s51
      %p58 = scmp.eq.s32.totalorder %s20, 3
      %p59 = por %p57, %p58
      %p60 = scmp.ne.s32.totalorder %s51, %s52
      %p61 = scmp.eq.s32.totalorder %s20, 0
      %p62 = por %p60, %p61
      %p63 = scmp.ne.s32.totalorder %s51, %s52
      %p64 = scmp.eq.s32.totalorder %s21, 3
      %p65 = por %p63, %p64
      %p67 = scmp.ne.s32.totalorder %s52, %s66
      %p68 = scmp.eq.s32.totalorder %s21, 0
      %p69 = por %p67, %p68
      %s71 = sadd.s32 %s70, 1
      %p74 = scmp.eq.s32.totalorder %s15, 3
      %p75 = scmp.ne.s32.totalorder %s70, %s72
      %p76 = scmp.eq.s32.totalorder %s15, 0
      %p77 = por %p75, %p76
      %p78 = scmp.ne.s32.totalorder %s70, %s72
      %p79 = scmp.eq.s32.totalorder %s20, 3
      %p80 = por %p78, %p79
      %p81 = scmp.ne.s32.totalorder %s72, %s73
      %p82 = scmp.eq.s32.totalorder %s20, 0
      %p83 = por %p81, %p82
      %p84 = scmp.ne.s32.totalorder %s72, %s73
      %p85 = scmp.eq.s32.totalorder %s21, 3
      %p86 = por %p84, %p85
      %p88 = scmp.ne.s32.totalorder %s73, %s87
      %p89 = scmp.eq.s32.totalorder %s21, 0
      %p90 = por %p88, %p89
      %s91 = ssub.s32 %s15, %s22
      %p92 = scmp.eq.s32.totalorder %s91, 0
      %s94 = sadd.s32 %s93, 1
      %s95 = scalar_select %p92, %s93, %s94
      %p98 = pneg %p92
      %p99 = scmp.eq.s32.totalorder %s15, 3
      %p100 = por %p98, %p99
      %p101 = scmp.ne.s32.totalorder %s93, %s96
      %p102 = scmp.eq.s32.totalorder %s15, 0
      %p103 = por %p101, %p102
      %p104 = scmp.ne.s32.totalorder %s93, %s96
      %p105 = scmp.eq.s32.totalorder %s20, 3
      %p106 = por %p104, %p105
      %p107 = scmp.ne.s32.totalorder %s96, %s97
      %p108 = scmp.eq.s32.totalorder %s20, 0
      %p109 = por %p107, %p108
      %p110 = scmp.ne.s32.totalorder %s96, %s97
      %p111 = scmp.eq.s32.totalorder %s21, 3
      %p112 = por %p110, %p111
      %p114 = scmp.ne.s32.totalorder %s97, %s113
      %p115 = scmp.eq.s32.totalorder %s21, 0
      %p116 = por %p114, %p115
      %p117 = scmp.le.s32.totalorder 1, %s15
      %p118 = scmp.lt.s32.totalorder %s15, 5
      %p119 = pnand %p117, %p118
      %p120 = pneg %p119
      // Predicated region
      $region9: #{tpu_custom_call.1} parent=5 // pred_check
        _
      $region10: #{tpu_custom_call.1} parent=5 // pred_check_branch
        %122 = sbr.rel (%p119) target = $region12
      $region11: #{tpu_custom_call.1} parent=5 // pred_region
        %s123 = ssub.s32 %s15, 1
        // Predicated region
        $region13: #{tpu_custom_call.1} parent=11 // pred_check
          %p124 = pneg %p62
        $region14: #{tpu_custom_call.1} parent=11 // pred_check_branch
          %126 = sbr.rel (%p124) target = $region16
        $region15: #{tpu_custom_call.1} parent=11 // pred_region
          _
        $region16: #{tpu_custom_call.1} parent=11 // pred_fallthru
          _
        // Predicated region
        $region17: #{tpu_custom_call.1} parent=11 // pred_check
          %p127 = pneg %p83
        $region18: #{tpu_custom_call.1} parent=11 // pred_check_branch
          %129 = sbr.rel (%p127) target = $region20
        $region19: #{tpu_custom_call.1} parent=11 // pred_region
          _
        $region20: #{tpu_custom_call.1} parent=11 // pred_fallthru
          _
      $region12: #{tpu_custom_call.1} parent=5 // pred_fallthru
        _
      %p130 = scmp.lt.s32.totalorder %s15, 4
      // Predicated region
      $region21: #{tpu_custom_call.1} parent=5 // pred_check
        %p131 = pneg %p130
      $region22: #{tpu_custom_call.1} parent=5 // pred_check_branch
        %133 = sbr.rel (%p131) target = $region24
      $region23: #{tpu_custom_call.1} parent=5 // pred_region
        // Predicated region
        $region25: #{tpu_custom_call.1} parent=23 // pred_check
          %p134 = pneg %p35
        $region26: #{tpu_custom_call.1} parent=23 // pred_check_branch
          %136 = sbr.rel (%p134) target = $region28
        $region27: #{tpu_custom_call.1} parent=23 // pred_region
          %s137 = sand.u32 %s25, 1
          %s138 = scalar_lea.sflag [#allocation3], %s137
          %s139 = sand.u32 %s25, 1
          %s140 = smul.addr %s139, 256
          %s141 = scalar_lea.vmem [#allocation2], %s140
          %143 = vsyncadd %s138, 0
          %s144 = smul.addr %s15, 32
          %s145 = smul.addr %s144, 8
          %s146 = scalar_lea.hbm %s0, %s145
          %s147 = sshll.u32 %s146, 4
          %s148 = int_to_ptr.hbm [resolvable:$true] %s147
          %s149 = sshll.u32 %s141, 4
          %s150 = int_to_ptr.vmem [resolvable:$true] %s149
          %155 = dma.hbm_to_vmem [thread:$0]  %s148, 4096, %s150, %s138, 256, 256, 16
        $region28: #{tpu_custom_call.1} parent=23 // pred_fallthru
          _
      $region24: #{tpu_custom_call.1} parent=5 // pred_fallthru
        _
      %p156 = scmp.le.s32.totalorder 1, %s15
      %p157 = scmp.lt.s32.totalorder %s15, 5
      %p158 = pnand %p156, %p157
      %p159 = pneg %p158
      // Predicated region
      $region29: #{tpu_custom_call.1} parent=5 // pred_check
        _
      $region30: #{tpu_custom_call.1} parent=5 // pred_check_branch
        %161 = sbr.rel (%p158) target = $region32
      $region31: #{tpu_custom_call.1} parent=5 // pred_region
        %s162 = ssub.s32 %s15, 1
        %s163 = sand.u32 %s28, 1
        %s164 = scalar_lea.sflag [#allocation3], %s163
        %s165 = sand.u32 %s28, 1
        %s166 = smul.addr %s165, 256
        %s167 = scalar_lea.vmem [#allocation2], %s166
        // Predicated region
        $region33: #{tpu_custom_call.1} parent=31 // pred_check
          %p168 = pneg %p41
        $region34: #{tpu_custom_call.1} parent=31 // pred_check_branch
          %170 = sbr.rel (%p168) target = $region36
        $region35: #{tpu_custom_call.1} parent=31 // pred_region
          %172 = dma.done %s164, 4096
        $region36: #{tpu_custom_call.1} parent=31 // pred_fallthru
          _
        %s173 = sand.u32 %s28, 1
        %s174 = scalar_lea.sflag [#allocation3], %s173
        %s175 = sand.u32 %s28, 1
        %s176 = smul.addr %s175, 256
        %s177 = scalar_lea.vmem [#allocation2], %s176
        %p178 = pneg %p41
        %p179 = pneg %p38
        %p180 = pneg %p62
        %p181 = pneg %p59
        %p182 = pneg %p83
        %p183 = pneg %p80
        %p184 = pneg %p109
        %p185 = pneg %p106
        %s186 = sand.u32 %s96, 1
        %s187 = scalar_lea.sflag [#allocation4], %s186
        %s188 = sand.u32 %s96, 1
        %s189 = smul.addr %s188, 256
        %s190 = scalar_lea.vmem [#allocation5], %s189
        %v191 = vld [vmem:[%s167] sm:$0xff]
        %v192 = vld [vmem:[%s167 + $0x8] sm:$0xff]
        %v193 = vld [vmem:[%s167 + $0x10] sm:$0xff]
        %v194 = vld [vmem:[%s167 + $0x18] sm:$0xff]
        %v195 = vld [vmem:[%s167 + $0x20] sm:$0xff]
        %v196 = vld [vmem:[%s167 + $0x28] sm:$0xff]
        %v197 = vld [vmem:[%s167 + $0x30] sm:$0xff]
        %v198 = vld [vmem:[%s167 + $0x38] sm:$0xff]
        %v199 = vld [vmem:[%s167 + $0x40] sm:$0xff]
        %v200 = vld [vmem:[%s167 + $0x48] sm:$0xff]
        %v201 = vld [vmem:[%s167 + $0x50] sm:$0xff]
        %v202 = vld [vmem:[%s167 + $0x58] sm:$0xff]
        %v203 = vld [vmem:[%s167 + $0x60] sm:$0xff]
        %v204 = vld [vmem:[%s167 + $0x68] sm:$0xff]
        %v205 = vld [vmem:[%s167 + $0x70] sm:$0xff]
        %v206 = vld [vmem:[%s167 + $0x78] sm:$0xff]
        %v207 = vld [vmem:[%s167 + $0x80] sm:$0xff]
        %v208 = vld [vmem:[%s167 + $0x88] sm:$0xff]
        %v209 = vld [vmem:[%s167 + $0x90] sm:$0xff]
        %v210 = vld [vmem:[%s167 + $0x98] sm:$0xff]
        %v211 = vld [vmem:[%s167 + $0xa0] sm:$0xff]
        %v212 = vld [vmem:[%s167 + $0xa8] sm:$0xff]
        %v213 = vld [vmem:[%s167 + $0xb0] sm:$0xff]
        %v214 = vld [vmem:[%s167 + $0xb8] sm:$0xff]
        %v215 = vld [vmem:[%s167 + $0xc0] sm:$0xff]
        %v216 = vld [vmem:[%s167 + $0xc8] sm:$0xff]
        %v217 = vld [vmem:[%s167 + $0xd0] sm:$0xff]
        %v218 = vld [vmem:[%s167 + $0xd8] sm:$0xff]
        %v219 = vld [vmem:[%s167 + $0xe0] sm:$0xff]
        %v220 = vld [vmem:[%s167 + $0xe8] sm:$0xff]
        %v221 = vld [vmem:[%s167 + $0xf0] sm:$0xff]
        %v222 = vld [vmem:[%s167 + $0xf8] sm:$0xff]
        %v223 = vadd.f32 %v191, %v192
        %224 = vadd.xlane.f32.xlu0 %v223
        %v225 = vpop.xlane.xlu0 %224
        %v226 = vadd.f32 %v193, %v194
        %227 = vadd.xlane.f32.xlu0 %v226
        %v228 = vpop.xlane.xlu0 %227
        %v229 = vadd.f32 %v195, %v196
        %230 = vadd.xlane.f32.xlu0 %v229
        %v231 = vpop.xlane.xlu0 %230
        %v232 = vadd.f32 %v197, %v198
        %233 = vadd.xlane.f32.xlu0 %v232
        %v234 = vpop.xlane.xlu0 %233
        %v235 = vadd.f32 %v199, %v200
        %236 = vadd.xlane.f32.xlu0 %v235
        %v237 = vpop.xlane.xlu0 %236
        %v238 = vadd.f32 %v201, %v202
        %239 = vadd.xlane.f32.xlu0 %v238
        %v240 = vpop.xlane.xlu0 %239
        %v241 = vadd.f32 %v203, %v204
        %242 = vadd.xlane.f32.xlu0 %v241
        %v243 = vpop.xlane.xlu0 %242
        %v244 = vadd.f32 %v205, %v206
        %245 = vadd.xlane.f32.xlu0 %v244
        %v246 = vpop.xlane.xlu0 %245
        %v247 = vadd.f32 %v207, %v208
        %248 = vadd.xlane.f32.xlu0 %v247
        %v249 = vpop.xlane.xlu0 %248
        %v250 = vadd.f32 %v209, %v210
        %251 = vadd.xlane.f32.xlu0 %v250
        %v252 = vpop.xlane.xlu0 %251
        %v253 = vadd.f32 %v211, %v212
        %254 = vadd.xlane.f32.xlu0 %v253
        %v255 = vpop.xlane.xlu0 %254
        %v256 = vadd.f32 %v213, %v214
        %257 = vadd.xlane.f32.xlu0 %v256
        %v258 = vpop.xlane.xlu0 %257
        %v259 = vadd.f32 %v215, %v216
        %260 = vadd.xlane.f32.xlu0 %v259
        %v261 = vpop.xlane.xlu0 %260
        %v262 = vadd.f32 %v217, %v218
        %263 = vadd.xlane.f32.xlu0 %v262
        %v264 = vpop.xlane.xlu0 %263
        %v265 = vadd.f32 %v219, %v220
        %266 = vadd.xlane.f32.xlu0 %v265
        %v267 = vpop.xlane.xlu0 %266
        %v268 = vadd.f32 %v221, %v222
        %269 = vadd.xlane.f32.xlu0 %v268
        %v270 = vpop.xlane.xlu0 %269
        %v271 = vmul.f32 %v225, 0.00390625
        %v272 = vmul.f32 %v228, 0.00390625
        %v273 = vmul.f32 %v231, 0.00390625
        %v274 = vmul.f32 %v234, 0.00390625
        %v275 = vmul.f32 %v237, 0.00390625
        %v276 = vmul.f32 %v240, 0.00390625
        %v277 = vmul.f32 %v243, 0.00390625
        %v278 = vmul.f32 %v246, 0.00390625
        %v279 = vmul.f32 %v249, 0.00390625
        %v280 = vmul.f32 %v252, 0.00390625
        %v281 = vmul.f32 %v255, 0.00390625
        %v282 = vmul.f32 %v258, 0.00390625
        %v283 = vmul.f32 %v261, 0.00390625
        %v284 = vmul.f32 %v264, 0.00390625
        %v285 = vmul.f32 %v267, 0.00390625
        %v286 = vmul.f32 %v270, 0.00390625
        %v287 = vld [vmem:[%s1] sm:$0xff]
        %v304 = vlaneseq
        %v305 = vand.u32 %v304, 127
        %v306 = vperm.slane %v271, %v305
        %v307 = vadd.s32 %v305, 4294967288
        %v308 = vperm.slane %v272, %v307
        %vm309 = vcmask 130112
        %v310 = vsel %vm309, %v308, %v306
        %v311 = vadd.s32 %v305, 4294967280
        %v312 = vperm.slane %v273, %v311
        %vm313 = vcmask 195712
        %v314 = vsel %vm313, %v312, %v310
        %v315 = vadd.s32 %v305, 4294967272
        %v316 = vperm.slane %v274, %v315
        %vm317 = vcmask 261312
        %v318 = vsel %vm317, %v316, %v314
        %v319 = vadd.s32 %v305, 4294967264
        %v320 = vperm.slane %v275, %v319
        %vm321 = vcmask 326912
        %v322 = vsel %vm321, %v320, %v318
        %v323 = vadd.s32 %v305, 4294967256
        %v324 = vperm.slane %v276, %v323
        %vm325 = vcmask 392512
        %v326 = vsel %vm325, %v324, %v322
        %v327 = vadd.s32 %v305, 4294967248
        %v328 = vperm.slane %v277, %v327
        %vm329 = vcmask 458112
        %v330 = vsel %vm329, %v328, %v326
        %v331 = vadd.s32 %v305, 4294967240
        %v332 = vperm.slane %v278, %v331
        %vm333 = vcmask 523712
        %v334 = vsel %vm333, %v332, %v330
        %v335 = vadd.s32 %v305, 4294967232
        %v336 = vperm.slane %v279, %v335
        %vm337 = vcmask 589312
        %v338 = vsel %vm337, %v336, %v334
        %v339 = vadd.s32 %v305, 4294967224
        %v340 = vperm.slane %v280, %v339
        %vm341 = vcmask 654912
        %v342 = vsel %vm341, %v340, %v338
        %v343 = vadd.s32 %v305, 4294967216
        %v344 = vperm.slane %v281, %v343
        %vm345 = vcmask 720512
        %v346 = vsel %vm345, %v344, %v342
        %v347 = vadd.s32 %v305, 4294967208
        %v348 = vperm.slane %v282, %v347
        %vm349 = vcmask 786112
        %v350 = vsel %vm349, %v348, %v346
        %v351 = vadd.s32 %v305, 4294967200
        %v352 = vperm.slane %v283, %v351
        %vm353 = vcmask 851712
        %v354 = vsel %vm353, %v352, %v350
        %v355 = vadd.s32 %v305, 4294967192
        %v356 = vperm.slane %v284, %v355
        %vm357 = vcmask 917312
        %v358 = vsel %vm357, %v356, %v354
        %v359 = vadd.s32 %v305, 4294967184
        %v360 = vperm.slane %v285, %v359
        %vm361 = vcmask 982912
        %v362 = vsel %vm361, %v360, %v358
        %v363 = vadd.s32 %v305, 4294967176
        %v364 = vperm.slane %v286, %v363
        %vm365 = vcmask 1048512
        %v366 = vsel %vm365, %v364, %v362
        %368 = vmatpush.xpose.msra.mxu0 0.0
        %369 = vmatpush.xpose.msra.mxu0 0.0
        %370 = vmatpush.xpose.msra.mxu0 0.0
        %371 = vmatpush.xpose.msra.mxu0 0.0
        %372 = vmatpush.xpose.msra.mxu0 0.0
        %373 = vmatpush.xpose.msra.mxu0 0.0
        %374 = vmatpush.xpose.msra.mxu0 0.0
        %375 = vmatpush.xpose.msra.mxu0 0.0
        %376 = vmatpush.xpose.msra.mxu0 0.0
        %377 = vmatpush.xpose.msra.mxu0 0.0
        %378 = vmatpush.xpose.msra.mxu0 0.0
        %379 = vmatpush.xpose.msra.mxu0 0.0
        %380 = vmatpush.xpose.msra.mxu0 0.0
        %381 = vmatpush.xpose.msra.mxu0 0.0
        %382 = vmatpush.xpose.msra.mxu0 0.0
        %383 = vmatpush.xpose.msra.mxu0 %v287
        %384 = vmatmul.f32.gmra.mxu0 %v366
        %v385 = vpop.f32.mrf.mxu0
        %v386 = vadd.f32 0.0, %v385
        %387 = vdwg.mxu0
        %v388 = vmax.f32 %v386, 0.0
        %v389 = vld [vmem:[%s2] sm:$0xff]
        %v390 = vld [vmem:[%s2 + $0x8] sm:$0xff]
        %v391 = vld [vmem:[%s2 + $0x10] sm:$0xff]
        %v392 = vld [vmem:[%s2 + $0x18] sm:$0xff]
        %v393 = vld [vmem:[%s2 + $0x20] sm:$0xff]
        %v394 = vld [vmem:[%s2 + $0x28] sm:$0xff]
        %v395 = vld [vmem:[%s2 + $0x30] sm:$0xff]
        %v396 = vld [vmem:[%s2 + $0x38] sm:$0xff]
        %v397 = vld [vmem:[%s2 + $0x40] sm:$0xff]
        %v398 = vld [vmem:[%s2 + $0x48] sm:$0xff]
        %v399 = vld [vmem:[%s2 + $0x50] sm:$0xff]
        %v400 = vld [vmem:[%s2 + $0x58] sm:$0xff]
        %v401 = vld [vmem:[%s2 + $0x60] sm:$0xff]
        %v402 = vld [vmem:[%s2 + $0x68] sm:$0xff]
        %v403 = vld [vmem:[%s2 + $0x70] sm:$0xff]
        %v404 = vld [vmem:[%s2 + $0x78] sm:$0xff]
        %vm405 = vcmask 64512
        %v407 = vsel %vm405, %v388, 0
        %v410 = vsel %vm405, %v389, 0
        %v413 = vsel %vm405, %v390, 0
        %v416 = vsel %vm405, %v391, 0
        %v419 = vsel %vm405, %v392, 0
        %v422 = vsel %vm405, %v393, 0
        %v425 = vsel %vm405, %v394, 0
        %v428 = vsel %vm405, %v395, 0
        %v431 = vsel %vm405, %v396, 0
        %v434 = vsel %vm405, %v397, 0
        %v437 = vsel %vm405, %v398, 0
        %v440 = vsel %vm405, %v399, 0
        %v443 = vsel %vm405, %v400, 0
        %v446 = vsel %vm405, %v401, 0
        %v449 = vsel %vm405, %v402, 0
        %v452 = vsel %vm405, %v403, 0
        %v455 = vsel %vm405, %v404, 0
        %457 = vmatpush.xpose.msra.mxu0 %v455
        %458 = vmatpush.xpose.msra.mxu0 %v452
        %459 = vmatpush.xpose.msra.mxu0 %v449
        %460 = vmatpush.xpose.msra.mxu0 %v446
        %461 = vmatpush.xpose.msra.mxu0 %v443
        %462 = vmatpush.xpose.msra.mxu0 %v440
        %463 = vmatpush.xpose.msra.mxu0 %v437
        %464 = vmatpush.xpose.msra.mxu0 %v434
        %465 = vmatpush.xpose.msra.mxu0 %v431
        %466 = vmatpush.xpose.msra.mxu0 %v428
        %467 = vmatpush.xpose.msra.mxu0 %v425
        %468 = vmatpush.xpose.msra.mxu0 %v422
        %469 = vmatpush.xpose.msra.mxu0 %v419
        %470 = vmatpush.xpose.msra.mxu0 %v416
        %471 = vmatpush.xpose.msra.mxu0 %v413
        %472 = vmatpush.xpose.msra.mxu0 %v410
        %473 = vmatmul.f32.gmra.mxu0 %v407
        %v474 = vpop.f32.mrf.mxu0
        %v475 = vadd.f32 0.0, %v474
        %476 = vdwg.mxu0
        %v477 = vxor.u32 %v475, 2147483648
        %v478 = vmul.f32 %v477, 1.442695
        %v479 = vpow.pop %v478
        %v480 = vadd.f32 %v479, 1.0
        %v481 = vrcp.pop %v480
        %v482 = vmul.f32 %v480, %v481
        %v483 = vsub.f32 1.0, %v482
        %v484 = vmul.f32 %v481, %v483
        %v485 = vadd.f32 %v481, %v484
        %vm486 = vweird.f32 %v480
        %vm487 = vweird.f32 %v481
        %vm488 = vmor %vm486, %vm487
        %v489 = vsel %vm488, %v481, %v485
        %v490 = vand.u32 2147483647, %v480
        %vm491 = vcmp.eq.f32.partialorder %v490, 8.507059e+37
        %v492 = vand.u32 %v480, 2147483648
        %v493 = vor.u32 1.1754944e-38, %v492
        %v494 = vsel %vm491, %v493, %v489
        %v495 = vmul.f32 1.0, %v494
        %v496 = vperm.slane %v495, 0
        %v497 = vlaneseq
        %v498 = vshrl.u32 %v497, 7
        %500 = vset.pattern.permute.xlu0 %v498
        %501 = vperm.xlu0 %500, %v496
        %v502 = vpop.permute.xlu0 %501
        %v503 = vlaneseq
        %v504 = vshrl.u32 %v503, 7
        %v505 = vadd.s32 %v504, 8
        %506 = vset.pattern.permute.xlu0 %v505
        %507 = vperm.xlu0 %506, %v496
        %v508 = vpop.permute.xlu0 %507
        %v509 = vlaneseq
        %v510 = vshrl.u32 %v509, 7
        %v511 = vadd.s32 %v510, 16
        %512 = vset.pattern.permute.xlu0 %v511
        %513 = vperm.xlu0 %512, %v496
        %v514 = vpop.permute.xlu0 %513
        %v515 = vlaneseq
        %v516 = vshrl.u32 %v515, 7
        %v517 = vadd.s32 %v516, 24
        %518 = vset.pattern.permute.xlu0 %v517
        %519 = vperm.xlu0 %518, %v496
        %v520 = vpop.permute.xlu0 %519
        %v521 = vlaneseq
        %v522 = vshrl.u32 %v521, 7
        %v523 = vadd.s32 %v522, 32
        %524 = vset.pattern.permute.xlu0 %v523
        %525 = vperm.xlu0 %524, %v496
        %v526 = vpop.permute.xlu0 %525
        %v527 = vlaneseq
        %v528 = vshrl.u32 %v527, 7
        %v529 = vadd.s32 %v528, 40
        %530 = vset.pattern.permute.xlu0 %v529
        %531 = vperm.xlu0 %530, %v496
        %v532 = vpop.permute.xlu0 %531
        %v533 = vlaneseq
        %v534 = vshrl.u32 %v533, 7
        %v535 = vadd.s32 %v534, 48
        %536 = vset.pattern.permute.xlu0 %v535
        %537 = vperm.xlu0 %536, %v496
        %v538 = vpop.permute.xlu0 %537
        %v539 = vlaneseq
        %v540 = vshrl.u32 %v539, 7
        %v541 = vadd.s32 %v540, 56
        %542 = vset.pattern.permute.xlu0 %v541
        %543 = vperm.xlu0 %542, %v496
        %v544 = vpop.permute.xlu0 %543
        %v545 = vlaneseq
        %v546 = vshrl.u32 %v545, 7
        %v547 = vadd.s32 %v546, 64
        %548 = vset.pattern.permute.xlu0 %v547
        %549 = vperm.xlu0 %548, %v496
        %v550 = vpop.permute.xlu0 %549
        %v551 = vlaneseq
        %v552 = vshrl.u32 %v551, 7
        %v553 = vadd.s32 %v552, 72
        %554 = vset.pattern.permute.xlu0 %v553
        %555 = vperm.xlu0 %554, %v496
        %v556 = vpop.permute.xlu0 %555
        %v557 = vlaneseq
        %v558 = vshrl.u32 %v557, 7
        %v559 = vadd.s32 %v558, 80
        %560 = vset.pattern.permute.xlu0 %v559
        %561 = vperm.xlu0 %560, %v496
        %v562 = vpop.permute.xlu0 %561
        %v563 = vlaneseq
        %v564 = vshrl.u32 %v563, 7
        %v565 = vadd.s32 %v564, 88
        %566 = vset.pattern.permute.xlu0 %v565
        %567 = vperm.xlu0 %566, %v496
        %v568 = vpop.permute.xlu0 %567
        %v569 = vlaneseq
        %v570 = vshrl.u32 %v569, 7
        %v571 = vadd.s32 %v570, 96
        %572 = vset.pattern.permute.xlu0 %v571
        %573 = vperm.xlu0 %572, %v496
        %v574 = vpop.permute.xlu0 %573
        %v575 = vlaneseq
        %v576 = vshrl.u32 %v575, 7
        %v577 = vadd.s32 %v576, 104
        %578 = vset.pattern.permute.xlu0 %v577
        %579 = vperm.xlu0 %578, %v496
        %v580 = vpop.permute.xlu0 %579
        %v581 = vlaneseq
        %v582 = vshrl.u32 %v581, 7
        %v583 = vadd.s32 %v582, 112
        %584 = vset.pattern.permute.xlu0 %v583
        %585 = vperm.xlu0 %584, %v496
        %v586 = vpop.permute.xlu0 %585
        %v587 = vlaneseq
        %v588 = vshrl.u32 %v587, 7
        %v589 = vadd.s32 %v588, 120
        %590 = vset.pattern.permute.xlu0 %v589
        %591 = vperm.xlu0 %590, %v496
        %v592 = vpop.permute.xlu0 %591
        %v593 = vmul.f32 %v191, %v502
        %v594 = vmul.f32 %v192, %v502
        %v595 = vmul.f32 %v193, %v508
        %v596 = vmul.f32 %v194, %v508
        %v597 = vmul.f32 %v195, %v514
        %v598 = vmul.f32 %v196, %v514
        %v599 = vmul.f32 %v197, %v520
        %v600 = vmul.f32 %v198, %v520
        %v601 = vmul.f32 %v199, %v526
        %v602 = vmul.f32 %v200, %v526
        %v603 = vmul.f32 %v201, %v532
        %v604 = vmul.f32 %v202, %v532
        %v605 = vmul.f32 %v203, %v538
        %v606 = vmul.f32 %v204, %v538
        %v607 = vmul.f32 %v205, %v544
        %v608 = vmul.f32 %v206, %v544
        %v609 = vmul.f32 %v207, %v550
        %v610 = vmul.f32 %v208, %v550
        %v611 = vmul.f32 %v209, %v556
        %v612 = vmul.f32 %v210, %v556
        %v613 = vmul.f32 %v211, %v562
        %v614 = vmul.f32 %v212, %v562
        %v615 = vmul.f32 %v213, %v568
        %v616 = vmul.f32 %v214, %v568
        %v617 = vmul.f32 %v215, %v574
        %v618 = vmul.f32 %v216, %v574
        %v619 = vmul.f32 %v217, %v580
        %v620 = vmul.f32 %v218, %v580
        %v621 = vmul.f32 %v219, %v586
        %v622 = vmul.f32 %v220, %v586
        %v623 = vmul.f32 %v221, %v592
        %v624 = vmul.f32 %v222, %v592
        %625 = vst [vmem:[%s190] sm:$0xff] %v593
        %626 = vst [vmem:[%s190 + $0x8] sm:$0xff] %v594
        %627 = vst [vmem:[%s190 + $0x10] sm:$0xff] %v595
        %628 = vst [vmem:[%s190 + $0x18] sm:$0xff] %v596
        %629 = vst [vmem:[%s190 + $0x20] sm:$0xff] %v597
        %630 = vst [vmem:[%s190 + $0x28] sm:$0xff] %v598
        %631 = vst [vmem:[%s190 + $0x30] sm:$0xff] %v599
        %632 = vst [vmem:[%s190 + $0x38] sm:$0xff] %v600
        %633 = vst [vmem:[%s190 + $0x40] sm:$0xff] %v601
        %634 = vst [vmem:[%s190 + $0x48] sm:$0xff] %v602
        %635 = vst [vmem:[%s190 + $0x50] sm:$0xff] %v603
        %636 = vst [vmem:[%s190 + $0x58] sm:$0xff] %v604
        %637 = vst [vmem:[%s190 + $0x60] sm:$0xff] %v605
        %638 = vst [vmem:[%s190 + $0x68] sm:$0xff] %v606
        %639 = vst [vmem:[%s190 + $0x70] sm:$0xff] %v607
        %640 = vst [vmem:[%s190 + $0x78] sm:$0xff] %v608
        %641 = vst [vmem:[%s190 + $0x80] sm:$0xff] %v609
        %642 = vst [vmem:[%s190 + $0x88] sm:$0xff] %v610
        %643 = vst [vmem:[%s190 + $0x90] sm:$0xff] %v611
        %644 = vst [vmem:[%s190 + $0x98] sm:$0xff] %v612
        %645 = vst [vmem:[%s190 + $0xa0] sm:$0xff] %v613
        %646 = vst [vmem:[%s190 + $0xa8] sm:$0xff] %v614
        %647 = vst [vmem:[%s190 + $0xb0] sm:$0xff] %v615
        %648 = vst [vmem:[%s190 + $0xb8] sm:$0xff] %v616
        %649 = vst [vmem:[%s190 + $0xc0] sm:$0xff] %v617
        %650 = vst [vmem:[%s190 + $0xc8] sm:$0xff] %v618
        %651 = vst [vmem:[%s190 + $0xd0] sm:$0xff] %v619
        %652 = vst [vmem:[%s190 + $0xd8] sm:$0xff] %v620
        %653 = vst [vmem:[%s190 + $0xe0] sm:$0xff] %v621
        %654 = vst [vmem:[%s190 + $0xe8] sm:$0xff] %v622
        %655 = vst [vmem:[%s190 + $0xf0] sm:$0xff] %v623
        %656 = vst [vmem:[%s190 + $0xf8] sm:$0xff] %v624
        %s657 = sand.u32 %s96, 1
        %s658 = scalar_lea.sflag [#allocation4], %s657
        %s659 = sand.u32 %s96, 1
        %s660 = smul.addr %s659, 256
        %s661 = scalar_lea.vmem [#allocation5], %s660
        // Predicated region
        $region37: #{tpu_custom_call.1} parent=31 // pred_check
          %p662 = pneg %p106
        $region38: #{tpu_custom_call.1} parent=31 // pred_check_branch
          %664 = sbr.rel (%p662) target = $region40
        $region39: #{tpu_custom_call.1} parent=31 // pred_region
          %666 = vsyncadd %s658, 0
          %s667 = smul.addr %s20, 32
          %s668 = smul.addr %s667, 8
          %s669 = scalar_lea.hbm %s3, %s668
          %s670 = sshll.u32 %s661, 4
          %s671 = int_to_ptr.vmem [resolvable:$true] %s670
          %s672 = sshll.u32 %s669, 4
          %s673 = int_to_ptr.hbm [resolvable:$true] %s672
          %678 = dma.vmem_to_hbm [thread:$0]  %s671, 4096, %s673, %s658, 256, 256, 16
        $region40: #{tpu_custom_call.1} parent=31 // pred_fallthru
          _
      $region32: #{tpu_custom_call.1} parent=5 // pred_fallthru
        _
      %p679 = scmp.le.s32.totalorder 2, %s15
      // Predicated region
      $region41: #{tpu_custom_call.1} parent=5 // pred_check
        %p680 = pneg %p679
      $region42: #{tpu_custom_call.1} parent=5 // pred_check_branch
        %682 = sbr.rel (%p680) target = $region44
      $region43: #{tpu_custom_call.1} parent=5 // pred_region
        %s683 = ssub.s32 %s15, 2
        // Predicated region
        $region45: #{tpu_custom_call.1} parent=43 // pred_check
          %p684 = pneg %p112
        $region46: #{tpu_custom_call.1} parent=43 // pred_check_branch
          %686 = sbr.rel (%p684) target = $region48
        $region47: #{tpu_custom_call.1} parent=43 // pred_region
          %s687 = sand.u32 %s97, 1
          %s688 = scalar_lea.sflag [#allocation4], %s687
          %s689 = sand.u32 %s97, 1
          %s690 = smul.addr %s689, 256
          %s691 = scalar_lea.vmem [#allocation5], %s690
          %693 = dma.done %s688, 4096
        $region48: #{tpu_custom_call.1} parent=43 // pred_fallthru
          _
      $region44: #{tpu_custom_call.1} parent=5 // pred_fallthru
        _
    $region6: #{tpu_custom_call.1} parent=1 // loop_footer
      %s19 = sadd.s32 1, %s15
    $region7: #{tpu_custom_call.1} parent=1 // loop_footer_branch
      %14 = sbr.rel target = $region3
    $region8: #{tpu_custom_call.1} parent=1 // loop_exit
      _
    %694 = vsyncpa [#allocation3], 1
    %s695 = scalar_lea.sflag [#allocation3], 1
    %696 = vsyncpa %s695, 1
    %697 = vsyncpa [#allocation4], 1
    %s698 = scalar_lea.sflag [#allocation4], 1
    %699 = vsyncpa %s698, 1

</llo_original>
